<compile_context>
chip_gen: v7x
topology: tpu7x:2x2x1
jax: 0.10.0
libtpu: 0.0.40
codegen_flags: <defaults>
</compile_context>

<pallas_src>
import jax
import jax.numpy as jnp
from jax.experimental import pallas as pl
from jax.experimental.pallas import tpu as pltpu


def _make_kernel(C):
    inv_c = 1.0 / C
    # Guard C==1: PyTorch would give NaN (0/0 std); we divide by 1 instead.
    inv_cm1 = 1.0 / max(C - 1, 1)

    def kernel(x_ref, o_ref):
        x = x_ref[...].astype(jnp.float32)                    # (Bn, C, T)

        # channel statistics (axis=1 -> sublane reduce), two-pass variance
        mean = jnp.sum(x, axis=1, keepdims=True) * inv_c       # (Bn, 1, T)
        d = x - mean
        var = jnp.sum(d * d, axis=1, keepdims=True) * inv_cm1
        std = jnp.sqrt(var)

        # softmax is shift-invariant along C: the -mean*scale term cancels,
        # so this is exactly softmax(scale * x) with scale = 8/(std+eps).
        # Exact divide: scale's error is multiplied by |x - x_max| inside exp.
        scale = 8.0 / (std + 1e-6)                              # (Bn, 1, T)
        x_max = jnp.max(x, axis=1, keepdims=True)               # (Bn, 1, T)
        e = jnp.exp(scale * (x - x_max))                        # (Bn, C, T)
        denom = jnp.sum(e, axis=1, keepdims=True)               # (Bn, 1, T)
        o_ref[...] = (e * pl.reciprocal(denom, approx=True)).astype(o_ref.dtype)

    return kernel


def _choose_tiles(N, C, HW_pad, itemsize):
    """Pick (Bn, T, vmem_limit): T | HW_pad (multiple of 128), Bn | N.

    Budget accounts for sublane padding of C and for the full-tile f32
    intermediates; pipeline footprint ~= 2*in + 2*out + ~2 intermediates.
    """
    # sublane packing: f32 -> 8 rows/vreg, bf16 -> 16, int8 -> 32
    sub = max(8, 32 // max(itemsize, 1))
    c_pad = ((C + sub - 1) // sub) * sub
    row_bytes = c_pad * 4  # intermediates are f32

    # per-generation budgets (v7x has only 64 MiB physical VMEM)
    try:
        vmem_phys = pltpu.get_tpu_info().vmem_capacity_bytes
    except Exception:
        vmem_phys = 64 * 1024 * 1024  # assume the tightest (v7x-safe) case
    if vmem_phys >= 96 * 1024 * 1024:          # v5e / v6e (128 MiB physical)
        block_budget = 8 * 1024 * 1024
        vmem_limit = 64 * 1024 * 1024
    else:                                       # v7x (64 MiB physical)
        block_budget = 4 * 1024 * 1024
        vmem_limit = 48 * 1024 * 1024

    # T: largest multiple-of-128 divisor of HW_pad whose slab fits the budget
    n_lanes = HW_pad // 128
    best_d = 1
    for d in range(n_lanes, 0, -1):
        if n_lanes % d == 0 and row_bytes * d * 128 <= block_budget:
            best_d = d
            break
    T = best_d * 128

    # Bn: largest divisor of N that keeps the block within budget
    max_bn = max(1, block_budget // (row_bytes * T))
    Bn = 1
    for d in range(min(N, max_bn), 0, -1):
        if N % d == 0:
            Bn = d
            break

    # megacore: keep >= 2 grid steps whenever the problem allows it
    if (N // Bn) * (HW_pad // T) < 2:
        if Bn > 1:
            for d in range(N // 2, 0, -1):      # shrink Bn so N//Bn >= 2
                if N % d == 0:
                    Bn = d
                    break
        elif n_lanes >= 2 and HW_pad // T == 1:
            for d in range(n_lanes // 2, 0, -1):  # split the lane axis instead
                if n_lanes % d == 0:
                    T = d * 128
                    break

    return Bn, T, vmem_limit


def modified_softmax(x):
    """x: [N, C, H, W] -> [N, C, H, W], softmax over C of 8*(x-mean)/(std+1e-6)."""
    N, C, H, W = x.shape
    HW = H * W
    itemsize = jnp.dtype(x.dtype).itemsize

    # pad only to a lane multiple (128); T is chosen to divide HW_pad so no
    # further padding is ever needed.
    HW_pad = ((HW + 127) // 128) * 128
    Bn, T, vmem_limit = _choose_tiles(N, C, HW_pad, itemsize)

    x2 = x.reshape(N, C, HW)
    if HW_pad != HW:
        # padded zero lanes produce softmax-of-zeros (1/C): no NaN/inf; they
        # are sliced off below.
        x2 = jnp.pad(x2, ((0, 0), (0, 0), (0, HW_pad - HW)))

    grid = (N // Bn, HW_pad // T)

    cost = pl.CostEstimate(
        flops=8 * N * C * HW_pad,
        transcendentals=N * C * HW_pad,
        bytes_accessed=2 * N * C * HW_pad * itemsize,
    )

    out = pl.pallas_call(
        _make_kernel(C),
        out_shape=jax.ShapeDtypeStruct((N, C, HW_pad), x.dtype),
        grid_spec=pltpu.PrefetchScalarGridSpec(
            num_scalar_prefetch=0,
            grid=grid,
            in_specs=[pl.BlockSpec((Bn, C, T), lambda n, t: (n, 0, t))],
            out_specs=pl.BlockSpec((Bn, C, T), lambda n, t: (n, 0, t)),
        ),
        compiler_params=pltpu.CompilerParams(
            dimension_semantics=("parallel", "parallel"),
            vmem_limit_bytes=vmem_limit,
        ),
        cost_estimate=cost,
    )(x2)

    if HW_pad != HW:
        out = out[:, :, :HW]
    return out.reshape(N, C, H, W)


def _reference(x):
    # pure-JAX reference of the PyTorch forward
    mean = jnp.mean(x, axis=1, keepdims=True)
    var = jnp.sum((x - mean) ** 2, axis=1, keepdims=True) / (x.shape[1] - 1)
    std = jnp.sqrt(var)
    xn = (x - mean) / (std + 1e-6)
    xn = xn * 8.0
    return jax.nn.softmax(xn, axis=1)


if __name__ == "__main__":
    key = jax.random.PRNGKey(0)
    x = jax.random.normal(key, (2, 4, 16, 16), dtype=jnp.float32)

    y = modified_softmax(x)
    y = jax.block_until_ready(y)

    y_ref = _reference(x)
    assert y.shape == x.shape
    # tolerance accounts for the EUP approximate reciprocal in the denominator
    assert jnp.allclose(y, y_ref, atol=2e-3, rtol=5e-3), "mismatch vs reference"

    print("KERNEL_OK")
</pallas_src>

<mosaic_0001>
module attributes {stable_mosaic.version = 11 : i64} {
  func.func @kernel(%arg0: i32, %arg1: i32, %arg2: memref<1x4x256xf32, #tpu.memory_space<vmem>>, %arg3: memref<1x4x256xf32, #tpu.memory_space<vmem>>) attributes {dimension_semantics = [#tpu.dimension_semantics<parallel>, #tpu.dimension_semantics<parallel>], iteration_bounds = array<i64: 2, 1>, scalar_prefetch = 0 : i64, scratch_operands = 0 : i64, tpu.core_type = #tpu.core_type<tc>, window_params = [{transform_indices = @transform_0, window_bounds = array<i64: 1, 4, 256>}, {transform_indices = @transform_1, window_bounds = array<i64: 1, 4, 256>}]} {
    %c0 = arith.constant 0 : index
    %c0_0 = arith.constant 0 : index
    %c0_1 = arith.constant 0 : index
    %0 = vector.load %arg2[%c0, %c0_0, %c0_1] : memref<1x4x256xf32, #tpu.memory_space<vmem>>, vector<1x4x256xf32>
    %cst = arith.constant dense<0.000000e+00> : vector<1x256xf32>
    %1 = vector.multi_reduction <add>, %0, %cst [1] : vector<1x4x256xf32> to vector<1x256xf32>
    %2 = vector.shape_cast %1 : vector<1x256xf32> to vector<1x1x256xf32>
    %cst_2 = arith.constant 2.500000e-01 : f32
    %3 = vector.broadcast %cst_2 : f32 to vector<1x1x256xf32>
    %4 = arith.mulf %2, %3 : vector<1x1x256xf32>
    %5 = vector.broadcast %4 : vector<1x1x256xf32> to vector<1x4x256xf32>
    %6 = arith.subf %0, %5 : vector<1x4x256xf32>
    %7 = arith.mulf %6, %6 : vector<1x4x256xf32>
    %cst_3 = arith.constant dense<0.000000e+00> : vector<1x256xf32>
    %8 = vector.multi_reduction <add>, %7, %cst_3 [1] : vector<1x4x256xf32> to vector<1x256xf32>
    %9 = vector.shape_cast %8 : vector<1x256xf32> to vector<1x1x256xf32>
    %cst_4 = arith.constant 0.333333343 : f32
    %10 = vector.broadcast %cst_4 : f32 to vector<1x1x256xf32>
    %11 = arith.mulf %9, %10 : vector<1x1x256xf32>
    %12 = math.sqrt %11 : vector<1x1x256xf32>
    %cst_5 = arith.constant 9.99999997E-7 : f32
    %13 = vector.broadcast %cst_5 : f32 to vector<1x1x256xf32>
    %14 = arith.addf %12, %13 : vector<1x1x256xf32>
    %cst_6 = arith.constant 8.000000e+00 : f32
    %15 = vector.broadcast %cst_6 : f32 to vector<1x1x256xf32>
    %16 = arith.divf %15, %14 : vector<1x1x256xf32>
    %cst_7 = arith.constant dense<0xFF800000> : vector<1x256xf32>
    %17 = vector.multi_reduction <maximumf>, %0, %cst_7 [1] : vector<1x4x256xf32> to vector<1x256xf32>
    %18 = vector.shape_cast %17 : vector<1x256xf32> to vector<1x1x256xf32>
    %19 = vector.broadcast %18 : vector<1x1x256xf32> to vector<1x4x256xf32>
    %20 = arith.subf %0, %19 : vector<1x4x256xf32>
    %21 = vector.broadcast %16 : vector<1x1x256xf32> to vector<1x4x256xf32>
    %22 = arith.mulf %21, %20 : vector<1x4x256xf32>
    %23 = math.exp %22 : vector<1x4x256xf32>
    %cst_8 = arith.constant dense<0.000000e+00> : vector<1x256xf32>
    %24 = vector.multi_reduction <add>, %23, %cst_8 [1] : vector<1x4x256xf32> to vector<1x256xf32>
    %25 = vector.shape_cast %24 : vector<1x256xf32> to vector<1x1x256xf32>
    %26 = tpu.reciprocal %25 {approx = true} : vector<1x1x256xf32> -> vector<1x1x256xf32>
    %27 = vector.broadcast %26 : vector<1x1x256xf32> to vector<1x4x256xf32>
    %28 = arith.mulf %23, %27 : vector<1x4x256xf32>
    %c0_9 = arith.constant 0 : index
    %c0_10 = arith.constant 0 : index
    %c0_11 = arith.constant 0 : index
    %29 = vector.load %arg3[%c0_9, %c0_10, %c0_11] : memref<1x4x256xf32, #tpu.memory_space<vmem>>, vector<1x4x256xf32>
    tpu.vector_store %arg3[%c0_9, %c0_10, %c0_11], %28 {strides = array<i32>} : memref<1x4x256xf32, #tpu.memory_space<vmem>>, vector<1x4x256xf32>,
    return
  }
  func.func @transform_0(%arg0: i32, %arg1: i32) -> (i32, i32, i32) {
    %c0_i32 = arith.constant 0 : i32
    %c0_i32_0 = arith.constant 0 : i32
    return %arg0, %c0_i32, %arg1 : i32, i32, i32
  }
  func.func @transform_1(%arg0: i32, %arg1: i32) -> (i32, i32, i32) {
    %c0_i32 = arith.constant 0 : i32
    %c0_i32_0 = arith.constant 0 : i32
    return %arg0, %c0_i32, %arg1 : i32, i32, i32
  }
}

</mosaic_0001>

<llo_original>
// kernel: tpu_custom_call.1
$region0: #{tpu_custom_call.1}
  #allocation0 [shape = 'u32[]', space=smem, size = 0x4, offset = 0x4, fixed_abs, tag = 'smem constant byte address 0x4 - core index']
  #allocation1 [shape = 'u32[144,128]{1,0:T(1,128)}', space=vmem, size = 0x12000, scoped, tag = 'internal scratch']
  %s0 = inlined_call_operand.hbm [shape: f32[2,4,256], index: 0, kind: input, shape index: {}]
  %s1 = inlined_call_operand.hbm [shape: f32[2,4,256], index: 1, kind: output, shape index: {}]
  %s2 = sld [smem:[#allocation0]]
  $region41: #{tpu_custom_call.1} parent=0
    _
  %s4 = ssub.s32 1, %s2
  %s5 = scalar_select 0, %s4, %s2
  $region1: #{tpu_custom_call.1} parent=0
    #allocation2 [shape = 'u8[8192]{0}', space=vmem, size = 0x2000, scoped, tag = 'input window, operand 0']
    #allocation3 [shape = 's32[2]{0}', space=sflag, size = 0x8, scoped, tag = 'scoped memory for tpu_custom_call.1']
    #allocation4 [shape = 's32[2]{0}', space=sflag, size = 0x8, scoped, tag = 'scoped memory for tpu_custom_call.1']
    #allocation5 [shape = 'u8[8192]{0}', space=vmem, size = 0x2000, scoped, tag = 'output window, operand 0']
    %6 = vsyncpa [#allocation3], 0
    %s7 = scalar_lea.sflag [#allocation3], 1
    %8 = vsyncpa %s7, 0
    %9 = vsyncpa [#allocation4], 0
    %s10 = scalar_lea.sflag [#allocation4], 1
    %11 = vsyncpa %s10, 0
    loop: start=0, step=1, limit=4
    $region2: #{tpu_custom_call.1} parent=1 // loop_pre_header
      _
    $region3: #{tpu_custom_call.1} parent=1 // loop_header
      %s13 = sphi 0, %s17
      %p14 = scmp.ge.s32.totalorder %s13, 4
      %s20 = sphi 0, %s32
      %s21 = sphi 0, %s28
      %s22 = sphi 0, %s20
      %s23 = sphi 0, %s21
      %s24 = sphi 0, %s22
      %s25 = sphi 0, %s23
      %s37 = sphi 0, %s39
      %s40 = sphi 0, %s37
      %s41 = sphi 0, %s40
      %s57 = sphi 0, %s41
      %s65 = sphi 0, %s67
      %s68 = sphi 0, %s65
      %s69 = sphi 0, %s68
      %s85 = sphi 0, %s69
    $region4: #{tpu_custom_call.1} parent=1 // loop_header_branch
      %16 = sbr.rel (%p14) target = $region8
    $region5: #{tpu_custom_call.1} parent=1 // loop_body
      %s18 = ssub.s32 %s13, 1
      %s19 = ssub.s32 %s13, 2
      %s26 = sadd.s32 1, %s21
      %p27 = scmp.ge.s32.totalorder %s26, 1
      %s28 = scalar_select %p27, 0, %s26
      %s29 = sadd.s32 1, %s20
      %s30 = scalar_select %p27, %s29, %s20
      %p31 = scmp.ge.s32.totalorder %s30, 2
      %s32 = scalar_select %p31, 0, %s30
      %s33 = ssub.s32 %s20, %s32
      %s34 = ssub.s32 %s21, %s28
      %s35 = sor.u32 %s33, %s34
      %p36 = scmp.eq.s32.totalorder %s35, 0
      %s38 = sadd.s32 %s37, 1
      %s39 = scalar_select %p36, %s37, %s38
      %p42 = pneg %p36
      %p43 = scmp.eq.s32.totalorder %s13, 1
      %p44 = por %p42, %p43
      %p45 = scmp.ne.s32.totalorder %s37, %s40
      %p46 = scmp.eq.s32.totalorder %s13, 0
      %p47 = por %p45, %p46
      %p48 = scmp.ne.s32.totalorder %s37, %s40
      %p49 = scmp.eq.s32.totalorder %s18, 1
      %p50 = por %p48, %p49
      %p51 = scmp.ne.s32.totalorder %s40, %s41
      %p52 = scmp.eq.s32.totalorder %s18, 0
      %p53 = por %p51, %p52
      %p54 = scmp.ne.s32.totalorder %s40, %s41
      %p55 = scmp.eq.s32.totalorder %s19, 1
      %p56 = por %p54, %p55
      %p58 = scmp.ne.s32.totalorder %s41, %s57
      %p59 = scmp.eq.s32.totalorder %s19, 0
      %p60 = por %p58, %p59
      %s61 = ssub.s32 %s20, %s32
      %s62 = ssub.s32 %s21, %s28
      %s63 = sor.u32 %s61, %s62
      %p64 = scmp.eq.s32.totalorder %s63, 0
      %s66 = sadd.s32 %s65, 1
      %s67 = scalar_select %p64, %s65, %s66
      %p70 = pneg %p64
      %p71 = scmp.eq.s32.totalorder %s13, 1
      %p72 = por %p70, %p71
      %p73 = scmp.ne.s32.totalorder %s65, %s68
      %p74 = scmp.eq.s32.totalorder %s13, 0
      %p75 = por %p73, %p74
      %p76 = scmp.ne.s32.totalorder %s65, %s68
      %p77 = scmp.eq.s32.totalorder %s18, 1
      %p78 = por %p76, %p77
      %p79 = scmp.ne.s32.totalorder %s68, %s69
      %p80 = scmp.eq.s32.totalorder %s18, 0
      %p81 = por %p79, %p80
      %p82 = scmp.ne.s32.totalorder %s68, %s69
      %p83 = scmp.eq.s32.totalorder %s19, 1
      %p84 = por %p82, %p83
      %p86 = scmp.ne.s32.totalorder %s69, %s85
      %p87 = scmp.eq.s32.totalorder %s19, 0
      %p88 = por %p86, %p87
      %p89 = scmp.le.s32.totalorder 1, %s13
      %p90 = scmp.lt.s32.totalorder %s13, 3
      %p91 = pnand %p89, %p90
      %p92 = pneg %p91
      // Predicated region
      $region9: #{tpu_custom_call.1} parent=5 // pred_check
        _
      $region10: #{tpu_custom_call.1} parent=5 // pred_check_branch
        %94 = sbr.rel (%p91) target = $region12
      $region11: #{tpu_custom_call.1} parent=5 // pred_region
        %s95 = ssub.s32 %s13, 1
      $region12: #{tpu_custom_call.1} parent=5 // pred_fallthru
        _
      %p96 = scmp.lt.s32.totalorder %s13, 2
      // Predicated region
      $region13: #{tpu_custom_call.1} parent=5 // pred_check
        %p97 = pneg %p96
      $region14: #{tpu_custom_call.1} parent=5 // pred_check_branch
        %99 = sbr.rel (%p97) target = $region16
      $region15: #{tpu_custom_call.1} parent=5 // pred_region
        // Predicated region
        $region17: #{tpu_custom_call.1} parent=15 // pred_check
          %p100 = pneg %p47
        $region18: #{tpu_custom_call.1} parent=15 // pred_check_branch
          %102 = sbr.rel (%p100) target = $region20
        $region19: #{tpu_custom_call.1} parent=15 // pred_region
          %s103 = sand.u32 %s37, 1
          %s104 = scalar_lea.sflag [#allocation3], %s103
          %s105 = sand.u32 %s37, 1
          %s106 = smul.addr %s105, 8
          %s107 = scalar_lea.vmem [#allocation2], %s106
          %s108 = smul.u32 2, %s21
          %s110 = ssub.s32 128, 128
          %111 = vsyncadd %s104, %s110
          %s112 = smul.addr %s20, 2
          %s113 = sadd.s32 %s108, %s112
          %s114 = smul.addr %s113, 64
          %s115 = scalar_lea.hbm %s0, %s114
          %s117 = sshll.u32 %s107, 4
          %s118 = int_to_ptr.vmem [resolvable:$true] %s117
          %120 = dma.hbm_to_vmem [thread:$0]  %s115, 128, %s118, %s104
        $region20: #{tpu_custom_call.1} parent=15 // pred_fallthru
          _
      $region16: #{tpu_custom_call.1} parent=5 // pred_fallthru
        _
      %p121 = scmp.le.s32.totalorder 1, %s13
      %p122 = scmp.lt.s32.totalorder %s13, 3
      %p123 = pnand %p121, %p122
      %p124 = pneg %p123
      // Predicated region
      $region21: #{tpu_custom_call.1} parent=5 // pred_check
        _
      $region22: #{tpu_custom_call.1} parent=5 // pred_check_branch
        %126 = sbr.rel (%p123) target = $region24
      $region23: #{tpu_custom_call.1} parent=5 // pred_region
        %s127 = ssub.s32 %s13, 1
        %s128 = sand.u32 %s40, 1
        %s129 = scalar_lea.sflag [#allocation3], %s128
        %s130 = sand.u32 %s40, 1
        %s131 = smul.addr %s130, 8
        %s132 = scalar_lea.vmem [#allocation2], %s131
        // Predicated region
        $region25: #{tpu_custom_call.1} parent=23 // pred_check
          %p133 = pneg %p53
        $region26: #{tpu_custom_call.1} parent=23 // pred_check_branch
          %135 = sbr.rel (%p133) target = $region28
        $region27: #{tpu_custom_call.1} parent=23 // pred_region
          %136 = dma.done %s129, 128
        $region28: #{tpu_custom_call.1} parent=23 // pred_fallthru
          _
        %s137 = sand.u32 %s40, 1
        %s138 = scalar_lea.sflag [#allocation3], %s137
        %s139 = sand.u32 %s40, 1
        %s140 = smul.addr %s139, 8
        %s141 = scalar_lea.vmem [#allocation2], %s140
        %p142 = pneg %p53
        %p143 = pneg %p50
        %p144 = pneg %p81
        %p145 = pneg %p78
        %s146 = sand.u32 %s68, 1
        %s147 = scalar_lea.sflag [#allocation4], %s146
        %s148 = sand.u32 %s68, 1
        %s149 = smul.addr %s148, 8
        %s150 = scalar_lea.vmem [#allocation5], %s149
        %s151 = smul.u32 2, %s23
        %s152 = smul.u32 2, %s23
        %v153 = vld [vmem:[%s132] sm:$0xff]
        %v155 = vcombine.high %v153, %v153
        %vm157 = vcmask 1043456
        %v158 = vsel %vm157, %v153, 0.0
        %v159 = vrot.slane %v158, 4
        %v160 = vadd.f32 %v158, %v159
        %v161 = vrot.slane %v160, 2
        %v162 = vadd.f32 %v160, %v161
        %v163 = vrot.slane %v162, 1
        %v164 = vadd.f32 %v162, %v163
        %v165 = vsel %vm157, %v155, 0.0
        %v166 = vrot.slane %v165, 4
        %v167 = vadd.f32 %v165, %v166
        %v168 = vrot.slane %v167, 2
        %v169 = vadd.f32 %v167, %v168
        %v170 = vrot.slane %v169, 1
        %v171 = vadd.f32 %v169, %v170
        %v172 = vmul.f32 %v164, 0.25
        %v173 = vmul.f32 %v171, 0.25
        %v176 = vcombine.low %v172, %v173
        %v178 = vsub.f32 %v153, %v176
        %v179 = vmul.f32 %v178, %v178
        %v181 = vcombine.high %v179, %v179
        %v183 = vsel %vm157, %v179, 0.0
        %v184 = vrot.slane %v183, 4
        %v185 = vadd.f32 %v183, %v184
        %v186 = vrot.slane %v185, 2
        %v187 = vadd.f32 %v185, %v186
        %v188 = vrot.slane %v187, 1
        %v189 = vadd.f32 %v187, %v188
        %v190 = vsel %vm157, %v181, 0.0
        %v191 = vrot.slane %v190, 4
        %v192 = vadd.f32 %v190, %v191
        %v193 = vrot.slane %v192, 2
        %v194 = vadd.f32 %v192, %v193
        %v195 = vrot.slane %v194, 1
        %v196 = vadd.f32 %v194, %v195
        %v197 = vmul.f32 %v189, 0.33333334
        %v198 = vmul.f32 %v196, 0.33333334
        %v199 = vrsqrt.pop %v197
        %v200 = vmul.f32 %v197, %v199
        %vm201 = vcmp.eq.f32.partialorder %v197, inf
        %v202 = vsel %vm201, %v197, %v200
        %vm203 = vcmp.eq.f32.partialorder %v197, 0.0
        %v204 = vand.u32 %v197, 2147483648
        %v205 = vsel %vm203, %v204, %v202
        %v206 = vrsqrt.pop %v198
        %v207 = vmul.f32 %v198, %v206
        %vm208 = vcmp.eq.f32.partialorder %v198, inf
        %v209 = vsel %vm208, %v198, %v207
        %vm210 = vcmp.eq.f32.partialorder %v198, 0.0
        %v211 = vand.u32 %v198, 2147483648
        %v212 = vsel %vm210, %v211, %v209
        %v213 = vadd.f32 %v205, 1e-06
        %v214 = vadd.f32 %v212, 1e-06
        %v215 = vrcp.pop %v213
        %v216 = vmul.f32 8.0, %v215
        %v217 = vrcp.pop %v214
        %v218 = vmul.f32 8.0, %v217
        %v219 = vsel %vm157, %v153, -inf
        %v220 = vrot.slane %v219, 4
        %v221 = vmax.f32 %v219, %v220
        %v222 = vrot.slane %v221, 2
        %v223 = vmax.f32 %v221, %v222
        %v224 = vrot.slane %v223, 1
        %v225 = vmax.f32 %v223, %v224
        %v226 = vsel %vm157, %v155, -inf
        %v227 = vrot.slane %v226, 4
        %v228 = vmax.f32 %v226, %v227
        %v229 = vrot.slane %v228, 2
        %v230 = vmax.f32 %v228, %v229
        %v231 = vrot.slane %v230, 1
        %v232 = vmax.f32 %v230, %v231
        %v235 = vcombine.low %v225, %v232
        %v237 = vsub.f32 %v153, %v235
        %v239 = vcombine.high %v237, %v237
        %v241 = vmul.f32 %v216, %v237
        %v242 = vmul.f32 %v218, %v239
        %v243 = vmul.f32 %v241, 1.442695
        %v244 = vpow.pop %v243
        %v245 = vmul.f32 %v242, 1.442695
        %v246 = vpow.pop %v245
        %v247 = vsel %vm157, %v244, 0.0
        %v248 = vrot.slane %v247, 4
        %v249 = vadd.f32 %v247, %v248
        %v250 = vrot.slane %v249, 2
        %v251 = vadd.f32 %v249, %v250
        %v252 = vrot.slane %v251, 1
        %v253 = vadd.f32 %v251, %v252
        %v254 = vsel %vm157, %v246, 0.0
        %v255 = vrot.slane %v254, 4
        %v256 = vadd.f32 %v254, %v255
        %v257 = vrot.slane %v256, 2
        %v258 = vadd.f32 %v256, %v257
        %v259 = vrot.slane %v258, 1
        %v260 = vadd.f32 %v258, %v259
        %v261 = vrcp.pop %v253
        %v262 = vrcp.pop %v260
        %v263 = vmul.f32 %v244, %v261
        %v264 = vmul.f32 %v246, %v262
        %v267 = vcombine.low %v263, %v264
        %269 = vst [vmem:[%s150] sm:$0xff] %v267
        %s270 = sand.u32 %s68, 1
        %s271 = scalar_lea.sflag [#allocation4], %s270
        %s272 = sand.u32 %s68, 1
        %s273 = smul.addr %s272, 8
        %s274 = scalar_lea.vmem [#allocation5], %s273
        // Predicated region
        $region29: #{tpu_custom_call.1} parent=23 // pred_check
          %p275 = pneg %p78
        $region30: #{tpu_custom_call.1} parent=23 // pred_check_branch
          %277 = sbr.rel (%p275) target = $region32
        $region31: #{tpu_custom_call.1} parent=23 // pred_region
          %s278 = smul.u32 2, %s23
          %s280 = ssub.s32 128, 128
          %281 = vsyncadd %s271, %s280
          %s282 = smul.addr %s22, 2
          %s283 = sadd.s32 %s278, %s282
          %s284 = smul.addr %s283, 64
          %s285 = scalar_lea.hbm %s1, %s284
          %s287 = sshll.u32 %s274, 4
          %s288 = int_to_ptr.vmem [resolvable:$true] %s287
          %290 = dma.vmem_to_hbm [thread:$0]  %s288, 128, %s285, %s271
        $region32: #{tpu_custom_call.1} parent=23 // pred_fallthru
          _
      $region24: #{tpu_custom_call.1} parent=5 // pred_fallthru
        _
      %p291 = scmp.le.s32.totalorder 2, %s13
      // Predicated region
      $region33: #{tpu_custom_call.1} parent=5 // pred_check
        %p292 = pneg %p291
      $region34: #{tpu_custom_call.1} parent=5 // pred_check_branch
        %294 = sbr.rel (%p292) target = $region36
      $region35: #{tpu_custom_call.1} parent=5 // pred_region
        %s295 = ssub.s32 %s13, 2
        // Predicated region
        $region37: #{tpu_custom_call.1} parent=35 // pred_check
          %p296 = pneg %p84
        $region38: #{tpu_custom_call.1} parent=35 // pred_check_branch
          %298 = sbr.rel (%p296) target = $region40
        $region39: #{tpu_custom_call.1} parent=35 // pred_region
          %s299 = sand.u32 %s69, 1
          %s300 = scalar_lea.sflag [#allocation4], %s299
          %s301 = sand.u32 %s69, 1
          %s302 = smul.addr %s301, 8
          %s303 = scalar_lea.vmem [#allocation5], %s302
          %304 = dma.done %s300, 128
        $region40: #{tpu_custom_call.1} parent=35 // pred_fallthru
          _
      $region36: #{tpu_custom_call.1} parent=5 // pred_fallthru
        _
    $region6: #{tpu_custom_call.1} parent=1 // loop_footer
      %s17 = sadd.s32 1, %s13
    $region7: #{tpu_custom_call.1} parent=1 // loop_footer_branch
      %12 = sbr.rel target = $region3
    $region8: #{tpu_custom_call.1} parent=1 // loop_exit
      _
    %305 = vsyncpa [#allocation3], 1
    %s306 = scalar_lea.sflag [#allocation3], 1
    %307 = vsyncpa %s306, 1
    %308 = vsyncpa [#allocation4], 1
    %s309 = scalar_lea.sflag [#allocation4], 1
    %310 = vsyncpa %s309, 1

</llo_original>
